<compile_context>
chip_gen: v7x
topology: tpu7x:2x2x1
jax: 0.10.0
libtpu: 0.0.40
codegen_flags: <defaults>
</compile_context>

<pallas_src>
import jax
import jax.numpy as jnp
from jax import lax
from jax.experimental import pallas as pl
from jax.experimental.pallas import tpu as pltpu

_LANES = 128   # batch samples per lane row
_CHUNK = 8     # sublane rows per inner-loop step (one (8,128) vreg per temp)


def _round_up(n, m):
    return ((n + m - 1) // m) * m


def _cdiv(n, m):
    return (n + m - 1) // m


def _inv4_kernel(x_ref, o_ref):
    # x_ref, o_ref: (16, tile_rows, 128) float32. Leading index k holds matrix
    # element (k // 4, k % 4) for a dense (tile_rows, 128) tile of the batch.
    tile_rows = x_ref.shape[1]
    n_chunks = tile_rows // _CHUNK

    def chunk_body(ci, carry):
        r0 = pl.multiple_of(ci * _CHUNK, _CHUNK)

        def g(i, j):
            # (CHUNK, 128) dense sublane/lane tile of element (i, j)
            return x_ref[i * 4 + j, pl.ds(r0, _CHUNK), :]

        def mm(m, n):
            # 2x2 matmul over element tuples (m00, m01, m10, m11), per-lane.
            m00, m01, m10, m11 = m
            n00, n01, n10, n11 = n
            return (m00 * n00 + m01 * n10,
                    m00 * n01 + m01 * n11,
                    m10 * n00 + m11 * n10,
                    m10 * n01 + m11 * n11)

        def sub(m, n):
            return tuple(mi - ni for mi, ni in zip(m, n))

        def add(m, n):
            return tuple(mi + ni for mi, ni in zip(m, n))

        def neg(m):
            return tuple(-mi for mi in m)

        def inv2(m):
            # _two_by_two_inverse: 1/det * [[d, -b], [-c, a]]
            m00, m01, m10, m11 = m
            det = m00 * m11 - m01 * m10
            r = 1.0 / det  # exact reciprocal; free (kernel is HBM-bound)
            return (m11 * r, -m01 * r, -m10 * r, m00 * r)

        a = (g(0, 0), g(0, 1), g(1, 0), g(1, 1))
        b = (g(0, 2), g(0, 3), g(1, 2), g(1, 3))
        c = (g(2, 0), g(2, 1), g(3, 0), g(3, 1))
        d = (g(2, 2), g(2, 3), g(3, 2), g(3, 3))

        a_inv = inv2(a)
        c_ainv = mm(c, a_inv)                    # c @ a_inv
        schur = inv2(sub(d, mm(c_ainv, b)))      # inv(d - c a^-1 b)
        ainv_b = mm(a_inv, b)                    # a_inv @ b
        bs = mm(ainv_b, schur)                   # a_inv @ b @ schur  (CSE'd)

        A = add(a_inv, mm(bs, c_ainv))           # a_inv + a_inv b S c a_inv
        Bq = neg(bs)                             # -a_inv b S
        Cq = neg(mm(schur, c_ainv))              # -S c a_inv
        Dq = schur                               #  S

        out_elems = (
            A[0], A[1], Bq[0], Bq[1],   # output row 0: (0,0)(0,1)(0,2)(0,3)
            A[2], A[3], Bq[2], Bq[3],   # output row 1
            Cq[0], Cq[1], Dq[0], Dq[1],  # output row 2
            Cq[2], Cq[3], Dq[2], Dq[3],  # output row 3
        )
        # 16 direct dense 128-lane stores per chunk (no relayout, no masking).
        for k, v in enumerate(out_elems):
            o_ref[k, pl.ds(r0, _CHUNK), :] = v
        return carry

    lax.fori_loop(0, n_chunks, chunk_body, 0, unroll=min(4, n_chunks))


def inverse_module(x, *, max_tile_rows=512):
    """Pallas implementation of InverseModule.forward. x: (B, 4, 4)."""
    B = x.shape[0]
    assert x.shape[1:] == (4, 4)
    x = x.astype(jnp.float32)

    # --- batch tiling --------------------------------------------------------
    # rows = number of 128-lane batch rows, rounded to a multiple of 8 so the
    # (rows, 128) tiles are vreg-aligned.
    rows = _round_up(max(1, _cdiv(B, _LANES)), 8)
    if rows <= 8:
        tile_rows = rows
    else:
        # Target >= 4 grid steps (>= 2 per TensorCore on v7x) while capping the
        # per-block footprint at 16*512*128*4 = 4 MiB — past the HBM-roofline
        # saturation point on v5e/v6e, comfortable in v7x's 64 MiB VMEM.
        tile_rows = min(max_tile_rows, _round_up(_cdiv(rows, 4), 8))
    grid = _cdiv(rows, tile_rows)
    total_rows = grid * tile_rows
    Bp = total_rows * _LANES

    # --- host-side layout glue ----------------------------------------------
    # TODO(synk): fold this transpose (and the inverse one below) into the
    # kernel's own DMA with an in-kernel lane deinterleave to save ~2 HBM
    # passes on this memory-bound op.
    x2 = x.reshape(B, 16)
    if Bp != B:
        # Only emitted for unaligned batches; placed directly before the
        # transpose so XLA fuses pad+transpose into a single pass. Padded
        # (all-zero) matrices produce Inf/NaN confined to their own lanes.
        x2 = jnp.pad(x2, ((0, Bp - B), (0, 0)))
    x3 = jnp.transpose(x2.reshape(total_rows, _LANES, 16), (2, 0, 1))

    out = pl.pallas_call(
        _inv4_kernel,
        out_shape=jax.ShapeDtypeStruct((16, total_rows, _LANES), jnp.float32),
        grid_spec=pltpu.PrefetchScalarGridSpec(
            num_scalar_prefetch=0,
            grid=(grid,),
            in_specs=[pl.BlockSpec((16, tile_rows, _LANES),
                                   lambda i: (0, i, 0))],
            out_specs=pl.BlockSpec((16, tile_rows, _LANES),
                                   lambda i: (0, i, 0)),
        ),
        compiler_params=pltpu.CompilerParams(
            dimension_semantics=("parallel",),
            vmem_limit_bytes=48 * 1024 * 1024,
        ),
    )(x3)

    y = jnp.transpose(out, (1, 2, 0)).reshape(Bp, 16)
    if Bp != B:
        y = y[:B]
    return y.reshape(B, 4, 4)


def _reference(x):
    """Pure-JAX reference mirroring the PyTorch blockwise inversion."""
    a = x[:, :2, :2]
    b = x[:, :2, 2:]
    c = x[:, 2:, :2]
    d = x[:, 2:, 2:]

    def inv2(m):
        ma = m[:, :1, :1]
        mb = m[:, :1, 1:]
        mc = m[:, 1:, :1]
        md = m[:, 1:, 1:]
        det = ma * md - mb * mc
        flipped = jnp.concatenate(
            [jnp.concatenate([md, -mb], 2), jnp.concatenate([-mc, ma], 2)], 1)
        return flipped / det

    a_inv = inv2(a)
    schur = inv2(d - c @ a_inv @ b)
    A = a_inv + a_inv @ b @ schur @ c @ a_inv
    B = -(a_inv @ b @ schur)
    C = -(schur @ c @ a_inv)
    D = schur
    return jnp.concatenate(
        [jnp.concatenate([A, B], 2), jnp.concatenate([C, D], 2)], 1)


if __name__ == "__main__":
    key = jax.random.PRNGKey(0)
    batch = 8
    # Well-conditioned random 4x4 matrices (diagonally dominated so the `a`
    # block and the Schur complement are invertible, as the module assumes).
    x = jax.random.normal(key, (batch, 4, 4), dtype=jnp.float32) \
        + 4.0 * jnp.eye(4, dtype=jnp.float32)[None]

    out = jax.block_until_ready(inverse_module(x))
    ref = _reference(x)

    assert out.shape == (batch, 4, 4)
    assert jnp.allclose(out, ref, atol=1e-4, rtol=1e-4), "mismatch vs reference"
    # sanity: x @ inv(x) ~ I
    assert jnp.allclose(x @ out, jnp.eye(4)[None], atol=1e-3, rtol=1e-3)
    print("KERNEL_OK")
</pallas_src>

<mosaic_0001>
module attributes {stable_mosaic.version = 11 : i64} {
  func.func @_inv4_kernel(%arg0: i32, %arg1: memref<16x8x128xf32, #tpu.memory_space<vmem>>, %arg2: memref<16x8x128xf32, #tpu.memory_space<vmem>>) attributes {dimension_semantics = [#tpu.dimension_semantics<parallel>], iteration_bounds = array<i64: 1>, scalar_prefetch = 0 : i64, scratch_operands = 0 : i64, tpu.core_type = #tpu.core_type<tc>, window_params = [{transform_indices = @transform_0, window_bounds = array<i64: 16, 8, 128>}, {transform_indices = @transform_1, window_bounds = array<i64: 16, 8, 128>}]} {
    %c0_i32 = arith.constant 0 : i32
    %c8_i32 = arith.constant 8 : i32
    %0 = arith.muli %c0_i32, %c8_i32 : i32
    %1 = tpu.assume_multiple %0, 8 : i32
    %c0 = arith.constant 0 : index
    %2 = arith.index_cast %1 : i32 to index
    %c0_0 = arith.constant 0 : index
    %3 = vector.load %arg1[%c0, %2, %c0_0] : memref<16x8x128xf32, #tpu.memory_space<vmem>>, vector<1x8x128xf32>
    %4 = vector.shape_cast %3 : vector<1x8x128xf32> to vector<8x128xf32>
    %c1 = arith.constant 1 : index
    %5 = arith.index_cast %1 : i32 to index
    %c0_1 = arith.constant 0 : index
    %6 = vector.load %arg1[%c1, %5, %c0_1] : memref<16x8x128xf32, #tpu.memory_space<vmem>>, vector<1x8x128xf32>
    %7 = vector.shape_cast %6 : vector<1x8x128xf32> to vector<8x128xf32>
    %c4 = arith.constant 4 : index
    %8 = arith.index_cast %1 : i32 to index
    %c0_2 = arith.constant 0 : index
    %9 = vector.load %arg1[%c4, %8, %c0_2] : memref<16x8x128xf32, #tpu.memory_space<vmem>>, vector<1x8x128xf32>
    %10 = vector.shape_cast %9 : vector<1x8x128xf32> to vector<8x128xf32>
    %c5 = arith.constant 5 : index
    %11 = arith.index_cast %1 : i32 to index
    %c0_3 = arith.constant 0 : index
    %12 = vector.load %arg1[%c5, %11, %c0_3] : memref<16x8x128xf32, #tpu.memory_space<vmem>>, vector<1x8x128xf32>
    %13 = vector.shape_cast %12 : vector<1x8x128xf32> to vector<8x128xf32>
    %c2 = arith.constant 2 : index
    %14 = arith.index_cast %1 : i32 to index
    %c0_4 = arith.constant 0 : index
    %15 = vector.load %arg1[%c2, %14, %c0_4] : memref<16x8x128xf32, #tpu.memory_space<vmem>>, vector<1x8x128xf32>
    %16 = vector.shape_cast %15 : vector<1x8x128xf32> to vector<8x128xf32>
    %c3 = arith.constant 3 : index
    %17 = arith.index_cast %1 : i32 to index
    %c0_5 = arith.constant 0 : index
    %18 = vector.load %arg1[%c3, %17, %c0_5] : memref<16x8x128xf32, #tpu.memory_space<vmem>>, vector<1x8x128xf32>
    %19 = vector.shape_cast %18 : vector<1x8x128xf32> to vector<8x128xf32>
    %c6 = arith.constant 6 : index
    %20 = arith.index_cast %1 : i32 to index
    %c0_6 = arith.constant 0 : index
    %21 = vector.load %arg1[%c6, %20, %c0_6] : memref<16x8x128xf32, #tpu.memory_space<vmem>>, vector<1x8x128xf32>
    %22 = vector.shape_cast %21 : vector<1x8x128xf32> to vector<8x128xf32>
    %c7 = arith.constant 7 : index
    %23 = arith.index_cast %1 : i32 to index
    %c0_7 = arith.constant 0 : index
    %24 = vector.load %arg1[%c7, %23, %c0_7] : memref<16x8x128xf32, #tpu.memory_space<vmem>>, vector<1x8x128xf32>
    %25 = vector.shape_cast %24 : vector<1x8x128xf32> to vector<8x128xf32>
    %c8 = arith.constant 8 : index
    %26 = arith.index_cast %1 : i32 to index
    %c0_8 = arith.constant 0 : index
    %27 = vector.load %arg1[%c8, %26, %c0_8] : memref<16x8x128xf32, #tpu.memory_space<vmem>>, vector<1x8x128xf32>
    %28 = vector.shape_cast %27 : vector<1x8x128xf32> to vector<8x128xf32>
    %c9 = arith.constant 9 : index
    %29 = arith.index_cast %1 : i32 to index
    %c0_9 = arith.constant 0 : index
    %30 = vector.load %arg1[%c9, %29, %c0_9] : memref<16x8x128xf32, #tpu.memory_space<vmem>>, vector<1x8x128xf32>
    %31 = vector.shape_cast %30 : vector<1x8x128xf32> to vector<8x128xf32>
    %c12 = arith.constant 12 : index
    %32 = arith.index_cast %1 : i32 to index
    %c0_10 = arith.constant 0 : index
    %33 = vector.load %arg1[%c12, %32, %c0_10] : memref<16x8x128xf32, #tpu.memory_space<vmem>>, vector<1x8x128xf32>
    %34 = vector.shape_cast %33 : vector<1x8x128xf32> to vector<8x128xf32>
    %c13 = arith.constant 13 : index
    %35 = arith.index_cast %1 : i32 to index
    %c0_11 = arith.constant 0 : index
    %36 = vector.load %arg1[%c13, %35, %c0_11] : memref<16x8x128xf32, #tpu.memory_space<vmem>>, vector<1x8x128xf32>
    %37 = vector.shape_cast %36 : vector<1x8x128xf32> to vector<8x128xf32>
    %c10 = arith.constant 10 : index
    %38 = arith.index_cast %1 : i32 to index
    %c0_12 = arith.constant 0 : index
    %39 = vector.load %arg1[%c10, %38, %c0_12] : memref<16x8x128xf32, #tpu.memory_space<vmem>>, vector<1x8x128xf32>
    %40 = vector.shape_cast %39 : vector<1x8x128xf32> to vector<8x128xf32>
    %c11 = arith.constant 11 : index
    %41 = arith.index_cast %1 : i32 to index
    %c0_13 = arith.constant 0 : index
    %42 = vector.load %arg1[%c11, %41, %c0_13] : memref<16x8x128xf32, #tpu.memory_space<vmem>>, vector<1x8x128xf32>
    %43 = vector.shape_cast %42 : vector<1x8x128xf32> to vector<8x128xf32>
    %c14 = arith.constant 14 : index
    %44 = arith.index_cast %1 : i32 to index
    %c0_14 = arith.constant 0 : index
    %45 = vector.load %arg1[%c14, %44, %c0_14] : memref<16x8x128xf32, #tpu.memory_space<vmem>>, vector<1x8x128xf32>
    %46 = vector.shape_cast %45 : vector<1x8x128xf32> to vector<8x128xf32>
    %c15 = arith.constant 15 : index
    %47 = arith.index_cast %1 : i32 to index
    %c0_15 = arith.constant 0 : index
    %48 = vector.load %arg1[%c15, %47, %c0_15] : memref<16x8x128xf32, #tpu.memory_space<vmem>>, vector<1x8x128xf32>
    %49 = vector.shape_cast %48 : vector<1x8x128xf32> to vector<8x128xf32>
    %50 = arith.mulf %4, %13 : vector<8x128xf32>
    %51 = arith.mulf %7, %10 : vector<8x128xf32>
    %52 = arith.subf %50, %51 : vector<8x128xf32>
    %cst = arith.constant 1.000000e+00 : f32
    %53 = vector.broadcast %cst : f32 to vector<8x128xf32>
    %54 = arith.divf %53, %52 : vector<8x128xf32>
    %55 = arith.mulf %13, %54 : vector<8x128xf32>
    %cst_16 = arith.constant 0.000000e+00 : f32
    %56 = vector.broadcast %cst_16 : f32 to vector<8x128xf32>
    %57 = arith.subf %56, %7 : vector<8x128xf32>
    %58 = arith.mulf %57, %54 : vector<8x128xf32>
    %cst_17 = arith.constant 0.000000e+00 : f32
    %59 = vector.broadcast %cst_17 : f32 to vector<8x128xf32>
    %60 = arith.subf %59, %10 : vector<8x128xf32>
    %61 = arith.mulf %60, %54 : vector<8x128xf32>
    %62 = arith.mulf %4, %54 : vector<8x128xf32>
    %63 = arith.mulf %28, %55 : vector<8x128xf32>
    %64 = arith.mulf %31, %61 : vector<8x128xf32>
    %65 = arith.addf %63, %64 : vector<8x128xf32>
    %66 = arith.mulf %28, %58 : vector<8x128xf32>
    %67 = arith.mulf %31, %62 : vector<8x128xf32>
    %68 = arith.addf %66, %67 : vector<8x128xf32>
    %69 = arith.mulf %34, %55 : vector<8x128xf32>
    %70 = arith.mulf %37, %61 : vector<8x128xf32>
    %71 = arith.addf %69, %70 : vector<8x128xf32>
    %72 = arith.mulf %34, %58 : vector<8x128xf32>
    %73 = arith.mulf %37, %62 : vector<8x128xf32>
    %74 = arith.addf %72, %73 : vector<8x128xf32>
    %75 = arith.mulf %65, %16 : vector<8x128xf32>
    %76 = arith.mulf %68, %22 : vector<8x128xf32>
    %77 = arith.addf %75, %76 : vector<8x128xf32>
    %78 = arith.mulf %65, %19 : vector<8x128xf32>
    %79 = arith.mulf %68, %25 : vector<8x128xf32>
    %80 = arith.addf %78, %79 : vector<8x128xf32>
    %81 = arith.mulf %71, %16 : vector<8x128xf32>
    %82 = arith.mulf %74, %22 : vector<8x128xf32>
    %83 = arith.addf %81, %82 : vector<8x128xf32>
    %84 = arith.mulf %71, %19 : vector<8x128xf32>
    %85 = arith.mulf %74, %25 : vector<8x128xf32>
    %86 = arith.addf %84, %85 : vector<8x128xf32>
    %87 = arith.subf %40, %77 : vector<8x128xf32>
    %88 = arith.subf %43, %80 : vector<8x128xf32>
    %89 = arith.subf %46, %83 : vector<8x128xf32>
    %90 = arith.subf %49, %86 : vector<8x128xf32>
    %91 = arith.mulf %87, %90 : vector<8x128xf32>
    %92 = arith.mulf %88, %89 : vector<8x128xf32>
    %93 = arith.subf %91, %92 : vector<8x128xf32>
    %cst_18 = arith.constant 1.000000e+00 : f32
    %94 = vector.broadcast %cst_18 : f32 to vector<8x128xf32>
    %95 = arith.divf %94, %93 : vector<8x128xf32>
    %96 = arith.mulf %90, %95 : vector<8x128xf32>
    %cst_19 = arith.constant 0.000000e+00 : f32
    %97 = vector.broadcast %cst_19 : f32 to vector<8x128xf32>
    %98 = arith.subf %97, %88 : vector<8x128xf32>
    %99 = arith.mulf %98, %95 : vector<8x128xf32>
    %cst_20 = arith.constant 0.000000e+00 : f32
    %100 = vector.broadcast %cst_20 : f32 to vector<8x128xf32>
    %101 = arith.subf %100, %89 : vector<8x128xf32>
    %102 = arith.mulf %101, %95 : vector<8x128xf32>
    %103 = arith.mulf %87, %95 : vector<8x128xf32>
    %104 = arith.mulf %55, %16 : vector<8x128xf32>
    %105 = arith.mulf %58, %22 : vector<8x128xf32>
    %106 = arith.addf %104, %105 : vector<8x128xf32>
    %107 = arith.mulf %55, %19 : vector<8x128xf32>
    %108 = arith.mulf %58, %25 : vector<8x128xf32>
    %109 = arith.addf %107, %108 : vector<8x128xf32>
    %110 = arith.mulf %61, %16 : vector<8x128xf32>
    %111 = arith.mulf %62, %22 : vector<8x128xf32>
    %112 = arith.addf %110, %111 : vector<8x128xf32>
    %113 = arith.mulf %61, %19 : vector<8x128xf32>
    %114 = arith.mulf %62, %25 : vector<8x128xf32>
    %115 = arith.addf %113, %114 : vector<8x128xf32>
    %116 = arith.mulf %106, %96 : vector<8x128xf32>
    %117 = arith.mulf %109, %102 : vector<8x128xf32>
    %118 = arith.addf %116, %117 : vector<8x128xf32>
    %119 = arith.mulf %106, %99 : vector<8x128xf32>
    %120 = arith.mulf %109, %103 : vector<8x128xf32>
    %121 = arith.addf %119, %120 : vector<8x128xf32>
    %122 = arith.mulf %112, %96 : vector<8x128xf32>
    %123 = arith.mulf %115, %102 : vector<8x128xf32>
    %124 = arith.addf %122, %123 : vector<8x128xf32>
    %125 = arith.mulf %112, %99 : vector<8x128xf32>
    %126 = arith.mulf %115, %103 : vector<8x128xf32>
    %127 = arith.addf %125, %126 : vector<8x128xf32>
    %128 = arith.mulf %118, %65 : vector<8x128xf32>
    %129 = arith.mulf %121, %71 : vector<8x128xf32>
    %130 = arith.addf %128, %129 : vector<8x128xf32>
    %131 = arith.mulf %118, %68 : vector<8x128xf32>
    %132 = arith.mulf %121, %74 : vector<8x128xf32>
    %133 = arith.addf %131, %132 : vector<8x128xf32>
    %134 = arith.mulf %124, %65 : vector<8x128xf32>
    %135 = arith.mulf %127, %71 : vector<8x128xf32>
    %136 = arith.addf %134, %135 : vector<8x128xf32>
    %137 = arith.mulf %124, %68 : vector<8x128xf32>
    %138 = arith.mulf %127, %74 : vector<8x128xf32>
    %139 = arith.addf %137, %138 : vector<8x128xf32>
    %140 = arith.addf %55, %130 : vector<8x128xf32>
    %141 = arith.addf %58, %133 : vector<8x128xf32>
    %142 = arith.addf %61, %136 : vector<8x128xf32>
    %143 = arith.addf %62, %139 : vector<8x128xf32>
    %cst_21 = arith.constant 0.000000e+00 : f32
    %144 = vector.broadcast %cst_21 : f32 to vector<8x128xf32>
    %145 = arith.subf %144, %118 : vector<8x128xf32>
    %cst_22 = arith.constant 0.000000e+00 : f32
    %146 = vector.broadcast %cst_22 : f32 to vector<8x128xf32>
    %147 = arith.subf %146, %121 : vector<8x128xf32>
    %cst_23 = arith.constant 0.000000e+00 : f32
    %148 = vector.broadcast %cst_23 : f32 to vector<8x128xf32>
    %149 = arith.subf %148, %124 : vector<8x128xf32>
    %cst_24 = arith.constant 0.000000e+00 : f32
    %150 = vector.broadcast %cst_24 : f32 to vector<8x128xf32>
    %151 = arith.subf %150, %127 : vector<8x128xf32>
    %152 = arith.mulf %96, %65 : vector<8x128xf32>
    %153 = arith.mulf %99, %71 : vector<8x128xf32>
    %154 = arith.addf %152, %153 : vector<8x128xf32>
    %155 = arith.mulf %96, %68 : vector<8x128xf32>
    %156 = arith.mulf %99, %74 : vector<8x128xf32>
    %157 = arith.addf %155, %156 : vector<8x128xf32>
    %158 = arith.mulf %102, %65 : vector<8x128xf32>
    %159 = arith.mulf %103, %71 : vector<8x128xf32>
    %160 = arith.addf %158, %159 : vector<8x128xf32>
    %161 = arith.mulf %102, %68 : vector<8x128xf32>
    %162 = arith.mulf %103, %74 : vector<8x128xf32>
    %163 = arith.addf %161, %162 : vector<8x128xf32>
    %cst_25 = arith.constant 0.000000e+00 : f32
    %164 = vector.broadcast %cst_25 : f32 to vector<8x128xf32>
    %165 = arith.subf %164, %154 : vector<8x128xf32>
    %cst_26 = arith.constant 0.000000e+00 : f32
    %166 = vector.broadcast %cst_26 : f32 to vector<8x128xf32>
    %167 = arith.subf %166, %157 : vector<8x128xf32>
    %cst_27 = arith.constant 0.000000e+00 : f32
    %168 = vector.broadcast %cst_27 : f32 to vector<8x128xf32>
    %169 = arith.subf %168, %160 : vector<8x128xf32>
    %cst_28 = arith.constant 0.000000e+00 : f32
    %170 = vector.broadcast %cst_28 : f32 to vector<8x128xf32>
    %171 = arith.subf %170, %163 : vector<8x128xf32>
    %c0_29 = arith.constant 0 : index
    %172 = arith.index_cast %1 : i32 to index
    %c0_30 = arith.constant 0 : index
    %173 = vector.load %arg2[%c0_29, %172, %c0_30] : memref<16x8x128xf32, #tpu.memory_space<vmem>>, vector<1x8x128xf32>
    %174 = vector.shape_cast %173 : vector<1x8x128xf32> to vector<8x128xf32>
    %175 = vector.shape_cast %140 : vector<8x128xf32> to vector<1x8x128xf32>
    tpu.vector_store %arg2[%c0_29, %172, %c0_30], %175 {strides = array<i32>} : memref<16x8x128xf32, #tpu.memory_space<vmem>>, vector<1x8x128xf32>,
    %c1_31 = arith.constant 1 : index
    %176 = arith.index_cast %1 : i32 to index
    %c0_32 = arith.constant 0 : index
    %177 = vector.load %arg2[%c1_31, %176, %c0_32] : memref<16x8x128xf32, #tpu.memory_space<vmem>>, vector<1x8x128xf32>
    %178 = vector.shape_cast %177 : vector<1x8x128xf32> to vector<8x128xf32>
    %179 = vector.shape_cast %141 : vector<8x128xf32> to vector<1x8x128xf32>
    tpu.vector_store %arg2[%c1_31, %176, %c0_32], %179 {strides = array<i32>} : memref<16x8x128xf32, #tpu.memory_space<vmem>>, vector<1x8x128xf32>,
    %c2_33 = arith.constant 2 : index
    %180 = arith.index_cast %1 : i32 to index
    %c0_34 = arith.constant 0 : index
    %181 = vector.load %arg2[%c2_33, %180, %c0_34] : memref<16x8x128xf32, #tpu.memory_space<vmem>>, vector<1x8x128xf32>
    %182 = vector.shape_cast %181 : vector<1x8x128xf32> to vector<8x128xf32>
    %183 = vector.shape_cast %145 : vector<8x128xf32> to vector<1x8x128xf32>
    tpu.vector_store %arg2[%c2_33, %180, %c0_34], %183 {strides = array<i32>} : memref<16x8x128xf32, #tpu.memory_space<vmem>>, vector<1x8x128xf32>,
    %c3_35 = arith.constant 3 : index
    %184 = arith.index_cast %1 : i32 to index
    %c0_36 = arith.constant 0 : index
    %185 = vector.load %arg2[%c3_35, %184, %c0_36] : memref<16x8x128xf32, #tpu.memory_space<vmem>>, vector<1x8x128xf32>
    %186 = vector.shape_cast %185 : vector<1x8x128xf32> to vector<8x128xf32>
    %187 = vector.shape_cast %147 : vector<8x128xf32> to vector<1x8x128xf32>
    tpu.vector_store %arg2[%c3_35, %184, %c0_36], %187 {strides = array<i32>} : memref<16x8x128xf32, #tpu.memory_space<vmem>>, vector<1x8x128xf32>,
    %c4_37 = arith.constant 4 : index
    %188 = arith.index_cast %1 : i32 to index
    %c0_38 = arith.constant 0 : index
    %189 = vector.load %arg2[%c4_37, %188, %c0_38] : memref<16x8x128xf32, #tpu.memory_space<vmem>>, vector<1x8x128xf32>
    %190 = vector.shape_cast %189 : vector<1x8x128xf32> to vector<8x128xf32>
    %191 = vector.shape_cast %142 : vector<8x128xf32> to vector<1x8x128xf32>
    tpu.vector_store %arg2[%c4_37, %188, %c0_38], %191 {strides = array<i32>} : memref<16x8x128xf32, #tpu.memory_space<vmem>>, vector<1x8x128xf32>,
    %c5_39 = arith.constant 5 : index
    %192 = arith.index_cast %1 : i32 to index
    %c0_40 = arith.constant 0 : index
    %193 = vector.load %arg2[%c5_39, %192, %c0_40] : memref<16x8x128xf32, #tpu.memory_space<vmem>>, vector<1x8x128xf32>
    %194 = vector.shape_cast %193 : vector<1x8x128xf32> to vector<8x128xf32>
    %195 = vector.shape_cast %143 : vector<8x128xf32> to vector<1x8x128xf32>
    tpu.vector_store %arg2[%c5_39, %192, %c0_40], %195 {strides = array<i32>} : memref<16x8x128xf32, #tpu.memory_space<vmem>>, vector<1x8x128xf32>,
    %c6_41 = arith.constant 6 : index
    %196 = arith.index_cast %1 : i32 to index
    %c0_42 = arith.constant 0 : index
    %197 = vector.load %arg2[%c6_41, %196, %c0_42] : memref<16x8x128xf32, #tpu.memory_space<vmem>>, vector<1x8x128xf32>
    %198 = vector.shape_cast %197 : vector<1x8x128xf32> to vector<8x128xf32>
    %199 = vector.shape_cast %149 : vector<8x128xf32> to vector<1x8x128xf32>
    tpu.vector_store %arg2[%c6_41, %196, %c0_42], %199 {strides = array<i32>} : memref<16x8x128xf32, #tpu.memory_space<vmem>>, vector<1x8x128xf32>,
    %c7_43 = arith.constant 7 : index
    %200 = arith.index_cast %1 : i32 to index
    %c0_44 = arith.constant 0 : index
    %201 = vector.load %arg2[%c7_43, %200, %c0_44] : memref<16x8x128xf32, #tpu.memory_space<vmem>>, vector<1x8x128xf32>
    %202 = vector.shape_cast %201 : vector<1x8x128xf32> to vector<8x128xf32>
    %203 = vector.shape_cast %151 : vector<8x128xf32> to vector<1x8x128xf32>
    tpu.vector_store %arg2[%c7_43, %200, %c0_44], %203 {strides = array<i32>} : memref<16x8x128xf32, #tpu.memory_space<vmem>>, vector<1x8x128xf32>,
    %c8_45 = arith.constant 8 : index
    %204 = arith.index_cast %1 : i32 to index
    %c0_46 = arith.constant 0 : index
    %205 = vector.load %arg2[%c8_45, %204, %c0_46] : memref<16x8x128xf32, #tpu.memory_space<vmem>>, vector<1x8x128xf32>
    %206 = vector.shape_cast %205 : vector<1x8x128xf32> to vector<8x128xf32>
    %207 = vector.shape_cast %165 : vector<8x128xf32> to vector<1x8x128xf32>
    tpu.vector_store %arg2[%c8_45, %204, %c0_46], %207 {strides = array<i32>} : memref<16x8x128xf32, #tpu.memory_space<vmem>>, vector<1x8x128xf32>,
    %c9_47 = arith.constant 9 : index
    %208 = arith.index_cast %1 : i32 to index
    %c0_48 = arith.constant 0 : index
    %209 = vector.load %arg2[%c9_47, %208, %c0_48] : memref<16x8x128xf32, #tpu.memory_space<vmem>>, vector<1x8x128xf32>
    %210 = vector.shape_cast %209 : vector<1x8x128xf32> to vector<8x128xf32>
    %211 = vector.shape_cast %167 : vector<8x128xf32> to vector<1x8x128xf32>
    tpu.vector_store %arg2[%c9_47, %208, %c0_48], %211 {strides = array<i32>} : memref<16x8x128xf32, #tpu.memory_space<vmem>>, vector<1x8x128xf32>,
    %c10_49 = arith.constant 10 : index
    %212 = arith.index_cast %1 : i32 to index
    %c0_50 = arith.constant 0 : index
    %213 = vector.load %arg2[%c10_49, %212, %c0_50] : memref<16x8x128xf32, #tpu.memory_space<vmem>>, vector<1x8x128xf32>
    %214 = vector.shape_cast %213 : vector<1x8x128xf32> to vector<8x128xf32>
    %215 = vector.shape_cast %96 : vector<8x128xf32> to vector<1x8x128xf32>
    tpu.vector_store %arg2[%c10_49, %212, %c0_50], %215 {strides = array<i32>} : memref<16x8x128xf32, #tpu.memory_space<vmem>>, vector<1x8x128xf32>,
    %c11_51 = arith.constant 11 : index
    %216 = arith.index_cast %1 : i32 to index
    %c0_52 = arith.constant 0 : index
    %217 = vector.load %arg2[%c11_51, %216, %c0_52] : memref<16x8x128xf32, #tpu.memory_space<vmem>>, vector<1x8x128xf32>
    %218 = vector.shape_cast %217 : vector<1x8x128xf32> to vector<8x128xf32>
    %219 = vector.shape_cast %99 : vector<8x128xf32> to vector<1x8x128xf32>
    tpu.vector_store %arg2[%c11_51, %216, %c0_52], %219 {strides = array<i32>} : memref<16x8x128xf32, #tpu.memory_space<vmem>>, vector<1x8x128xf32>,
    %c12_53 = arith.constant 12 : index
    %220 = arith.index_cast %1 : i32 to index
    %c0_54 = arith.constant 0 : index
    %221 = vector.load %arg2[%c12_53, %220, %c0_54] : memref<16x8x128xf32, #tpu.memory_space<vmem>>, vector<1x8x128xf32>
    %222 = vector.shape_cast %221 : vector<1x8x128xf32> to vector<8x128xf32>
    %223 = vector.shape_cast %169 : vector<8x128xf32> to vector<1x8x128xf32>
    tpu.vector_store %arg2[%c12_53, %220, %c0_54], %223 {strides = array<i32>} : memref<16x8x128xf32, #tpu.memory_space<vmem>>, vector<1x8x128xf32>,
    %c13_55 = arith.constant 13 : index
    %224 = arith.index_cast %1 : i32 to index
    %c0_56 = arith.constant 0 : index
    %225 = vector.load %arg2[%c13_55, %224, %c0_56] : memref<16x8x128xf32, #tpu.memory_space<vmem>>, vector<1x8x128xf32>
    %226 = vector.shape_cast %225 : vector<1x8x128xf32> to vector<8x128xf32>
    %227 = vector.shape_cast %171 : vector<8x128xf32> to vector<1x8x128xf32>
    tpu.vector_store %arg2[%c13_55, %224, %c0_56], %227 {strides = array<i32>} : memref<16x8x128xf32, #tpu.memory_space<vmem>>, vector<1x8x128xf32>,
    %c14_57 = arith.constant 14 : index
    %228 = arith.index_cast %1 : i32 to index
    %c0_58 = arith.constant 0 : index
    %229 = vector.load %arg2[%c14_57, %228, %c0_58] : memref<16x8x128xf32, #tpu.memory_space<vmem>>, vector<1x8x128xf32>
    %230 = vector.shape_cast %229 : vector<1x8x128xf32> to vector<8x128xf32>
    %231 = vector.shape_cast %102 : vector<8x128xf32> to vector<1x8x128xf32>
    tpu.vector_store %arg2[%c14_57, %228, %c0_58], %231 {strides = array<i32>} : memref<16x8x128xf32, #tpu.memory_space<vmem>>, vector<1x8x128xf32>,
    %c15_59 = arith.constant 15 : index
    %232 = arith.index_cast %1 : i32 to index
    %c0_60 = arith.constant 0 : index
    %233 = vector.load %arg2[%c15_59, %232, %c0_60] : memref<16x8x128xf32, #tpu.memory_space<vmem>>, vector<1x8x128xf32>
    %234 = vector.shape_cast %233 : vector<1x8x128xf32> to vector<8x128xf32>
    %235 = vector.shape_cast %103 : vector<8x128xf32> to vector<1x8x128xf32>
    tpu.vector_store %arg2[%c15_59, %232, %c0_60], %235 {strides = array<i32>} : memref<16x8x128xf32, #tpu.memory_space<vmem>>, vector<1x8x128xf32>,
    %c1_i32 = arith.constant 1 : i32
    return
  }
  func.func @transform_0(%arg0: i32) -> (i32, i32, i32) {
    %c0_i32 = arith.constant 0 : i32
    %c0_i32_0 = arith.constant 0 : i32
    %c0_i32_1 = arith.constant 0 : i32
    return %c0_i32, %arg0, %c0_i32_0 : i32, i32, i32
  }
  func.func @transform_1(%arg0: i32) -> (i32, i32, i32) {
    %c0_i32 = arith.constant 0 : i32
    %c0_i32_0 = arith.constant 0 : i32
    %c0_i32_1 = arith.constant 0 : i32
    return %c0_i32, %arg0, %c0_i32_0 : i32, i32, i32
  }
}

</mosaic_0001>

<llo_original>
// kernel: tpu_custom_call.1
$region0: #{tpu_custom_call.1}
  #allocation0 [shape = 'u32[]', space=smem, size = 0x4, offset = 0x4, fixed_abs, tag = 'smem constant byte address 0x4 - core index']
  #allocation1 [shape = 'u32[144,128]{1,0:T(1,128)}', space=vmem, size = 0x12000, scoped, tag = 'internal scratch']
  %s0 = inlined_call_operand.hbm [shape: f32[16,8,128], index: 0, kind: input, shape index: {}]
  %s1 = inlined_call_operand.hbm [shape: f32[16,8,128], index: 1, kind: output, shape index: {}]
  %s2 = sld [smem:[#allocation0]]
  $region18: #{tpu_custom_call.1} parent=0
    _
  %s4 = ssub.s32 1, %s2
  %s5 = scalar_select 0, %s4, %s2
  $region1: #{tpu_custom_call.1} parent=0
    #allocation2 [shape = 'u8[65536]{0}', space=vmem, size = 0x10000, scoped, tag = 'input window, operand 0, single buffered']
    #allocation3 [shape = 's32[1]{0}', space=sflag, size = 0x4, scoped, tag = 'scoped memory for tpu_custom_call.1']
    #allocation4 [shape = 's32[1]{0}', space=sflag, size = 0x4, scoped, tag = 'scoped memory for tpu_custom_call.1']
    #allocation5 [shape = 'u8[65536]{0}', space=vmem, size = 0x10000, scoped, tag = 'output window, operand 0, single buffered']
    %6 = vsyncpa [#allocation3], 0
    %7 = vsyncpa [#allocation4], 0
    // Predicated region
    $region2: #{tpu_custom_call.1} parent=1 // pred_check
      _
    $region3: #{tpu_custom_call.1} parent=1 // pred_check_branch
      %9 = sbr.rel (0) target = $region5
    $region4: #{tpu_custom_call.1} parent=1 // pred_region
      %s11 = ssub.s32 2048, 2048
      %12 = vsyncadd [#allocation3], %s11
      %s13 = sshll.u32 [#allocation2], 4
      %s14 = int_to_ptr.vmem [resolvable:$true] %s13
      %19 = dma.hbm_to_vmem [thread:$0]  %s0, 2048, %s14, [#allocation3], 128, 128, 8
    $region5: #{tpu_custom_call.1} parent=1 // pred_fallthru
      _
    // Predicated region
    $region6: #{tpu_custom_call.1} parent=1 // pred_check
      _
    $region7: #{tpu_custom_call.1} parent=1 // pred_check_branch
      %21 = sbr.rel (0) target = $region9
    $region8: #{tpu_custom_call.1} parent=1 // pred_region
      %22 = dma.done [#allocation3], 2048
    $region9: #{tpu_custom_call.1} parent=1 // pred_fallthru
      _
    %v23 = vld [vmem:[#allocation2] sm:$0xff]
    %s24 = sadd.s32 0, 8
    %s25 = scalar_lea.vmem [#allocation2], %s24
    %v26 = vld [vmem:[%s25] sm:$0xff]
    %s27 = sadd.s32 0, 32
    %s28 = scalar_lea.vmem [#allocation2], %s27
    %v29 = vld [vmem:[%s28] sm:$0xff]
    %s30 = sadd.s32 0, 40
    %s31 = scalar_lea.vmem [#allocation2], %s30
    %v32 = vld [vmem:[%s31] sm:$0xff]
    %s33 = sadd.s32 0, 16
    %s34 = scalar_lea.vmem [#allocation2], %s33
    %v35 = vld [vmem:[%s34] sm:$0xff]
    %s36 = sadd.s32 0, 24
    %s37 = scalar_lea.vmem [#allocation2], %s36
    %v38 = vld [vmem:[%s37] sm:$0xff]
    %s39 = sadd.s32 0, 48
    %s40 = scalar_lea.vmem [#allocation2], %s39
    %v41 = vld [vmem:[%s40] sm:$0xff]
    %s42 = sadd.s32 0, 56
    %s43 = scalar_lea.vmem [#allocation2], %s42
    %v44 = vld [vmem:[%s43] sm:$0xff]
    %s45 = sadd.s32 0, 64
    %s46 = scalar_lea.vmem [#allocation2], %s45
    %v47 = vld [vmem:[%s46] sm:$0xff]
    %s48 = sadd.s32 0, 72
    %s49 = scalar_lea.vmem [#allocation2], %s48
    %v50 = vld [vmem:[%s49] sm:$0xff]
    %s51 = sadd.s32 0, 96
    %s52 = scalar_lea.vmem [#allocation2], %s51
    %v53 = vld [vmem:[%s52] sm:$0xff]
    %s54 = sadd.s32 0, 104
    %s55 = scalar_lea.vmem [#allocation2], %s54
    %v56 = vld [vmem:[%s55] sm:$0xff]
    %s57 = sadd.s32 0, 80
    %s58 = scalar_lea.vmem [#allocation2], %s57
    %v59 = vld [vmem:[%s58] sm:$0xff]
    %s60 = sadd.s32 0, 88
    %s61 = scalar_lea.vmem [#allocation2], %s60
    %v62 = vld [vmem:[%s61] sm:$0xff]
    %s63 = sadd.s32 0, 112
    %s64 = scalar_lea.vmem [#allocation2], %s63
    %v65 = vld [vmem:[%s64] sm:$0xff]
    %s66 = sadd.s32 0, 120
    %s67 = scalar_lea.vmem [#allocation2], %s66
    %v68 = vld [vmem:[%s67] sm:$0xff]
    %v69 = vmul.f32 %v23, %v32
    %v70 = vmul.f32 %v26, %v29
    %v71 = vsub.f32 %v69, %v70
    %v72 = vrcp.pop %v71
    %v73 = vmul.f32 1.0, %v72
    %v74 = vmul.f32 %v32, %v73
    %v75 = vsub.f32 0.0, %v26
    %v76 = vmul.f32 %v75, %v73
    %v77 = vsub.f32 0.0, %v29
    %v78 = vmul.f32 %v77, %v73
    %v79 = vmul.f32 %v23, %v73
    %v80 = vmul.f32 %v47, %v74
    %v81 = vmul.f32 %v50, %v78
    %v82 = vadd.f32 %v80, %v81
    %v83 = vmul.f32 %v47, %v76
    %v84 = vmul.f32 %v50, %v79
    %v85 = vadd.f32 %v83, %v84
    %v86 = vmul.f32 %v53, %v74
    %v87 = vmul.f32 %v56, %v78
    %v88 = vadd.f32 %v86, %v87
    %v89 = vmul.f32 %v53, %v76
    %v90 = vmul.f32 %v56, %v79
    %v91 = vadd.f32 %v89, %v90
    %v92 = vmul.f32 %v82, %v35
    %v93 = vmul.f32 %v85, %v41
    %v94 = vadd.f32 %v92, %v93
    %v95 = vmul.f32 %v82, %v38
    %v96 = vmul.f32 %v85, %v44
    %v97 = vadd.f32 %v95, %v96
    %v98 = vmul.f32 %v88, %v35
    %v99 = vmul.f32 %v91, %v41
    %v100 = vadd.f32 %v98, %v99
    %v101 = vmul.f32 %v88, %v38
    %v102 = vmul.f32 %v91, %v44
    %v103 = vadd.f32 %v101, %v102
    %v104 = vsub.f32 %v59, %v94
    %v105 = vsub.f32 %v62, %v97
    %v106 = vsub.f32 %v65, %v100
    %v107 = vsub.f32 %v68, %v103
    %v108 = vmul.f32 %v104, %v107
    %v109 = vmul.f32 %v105, %v106
    %v110 = vsub.f32 %v108, %v109
    %v111 = vrcp.pop %v110
    %v112 = vmul.f32 1.0, %v111
    %v113 = vmul.f32 %v107, %v112
    %v114 = vsub.f32 0.0, %v105
    %v115 = vmul.f32 %v114, %v112
    %v116 = vsub.f32 0.0, %v106
    %v117 = vmul.f32 %v116, %v112
    %v118 = vmul.f32 %v104, %v112
    %v119 = vmul.f32 %v74, %v35
    %v120 = vmul.f32 %v76, %v41
    %v121 = vadd.f32 %v119, %v120
    %v122 = vmul.f32 %v74, %v38
    %v123 = vmul.f32 %v76, %v44
    %v124 = vadd.f32 %v122, %v123
    %v125 = vmul.f32 %v78, %v35
    %v126 = vmul.f32 %v79, %v41
    %v127 = vadd.f32 %v125, %v126
    %v128 = vmul.f32 %v78, %v38
    %v129 = vmul.f32 %v79, %v44
    %v130 = vadd.f32 %v128, %v129
    %v131 = vmul.f32 %v121, %v113
    %v132 = vmul.f32 %v124, %v117
    %v133 = vadd.f32 %v131, %v132
    %v134 = vmul.f32 %v121, %v115
    %v135 = vmul.f32 %v124, %v118
    %v136 = vadd.f32 %v134, %v135
    %v137 = vmul.f32 %v127, %v113
    %v138 = vmul.f32 %v130, %v117
    %v139 = vadd.f32 %v137, %v138
    %v140 = vmul.f32 %v127, %v115
    %v141 = vmul.f32 %v130, %v118
    %v142 = vadd.f32 %v140, %v141
    %v143 = vmul.f32 %v133, %v82
    %v144 = vmul.f32 %v136, %v88
    %v145 = vadd.f32 %v143, %v144
    %v146 = vmul.f32 %v133, %v85
    %v147 = vmul.f32 %v136, %v91
    %v148 = vadd.f32 %v146, %v147
    %v149 = vmul.f32 %v139, %v82
    %v150 = vmul.f32 %v142, %v88
    %v151 = vadd.f32 %v149, %v150
    %v152 = vmul.f32 %v139, %v85
    %v153 = vmul.f32 %v142, %v91
    %v154 = vadd.f32 %v152, %v153
    %v155 = vadd.f32 %v74, %v145
    %v156 = vadd.f32 %v76, %v148
    %v157 = vadd.f32 %v78, %v151
    %v158 = vadd.f32 %v79, %v154
    %v159 = vsub.f32 0.0, %v133
    %v160 = vsub.f32 0.0, %v136
    %v161 = vsub.f32 0.0, %v139
    %v162 = vsub.f32 0.0, %v142
    %v163 = vmul.f32 %v113, %v82
    %v164 = vmul.f32 %v115, %v88
    %v165 = vadd.f32 %v163, %v164
    %v166 = vmul.f32 %v113, %v85
    %v167 = vmul.f32 %v115, %v91
    %v168 = vadd.f32 %v166, %v167
    %v169 = vmul.f32 %v117, %v82
    %v170 = vmul.f32 %v118, %v88
    %v171 = vadd.f32 %v169, %v170
    %v172 = vmul.f32 %v117, %v85
    %v173 = vmul.f32 %v118, %v91
    %v174 = vadd.f32 %v172, %v173
    %v175 = vsub.f32 0.0, %v165
    %v176 = vsub.f32 0.0, %v168
    %v177 = vsub.f32 0.0, %v171
    %v178 = vsub.f32 0.0, %v174
    %179 = vst [vmem:[#allocation5] sm:$0xff] %v155
    %s180 = scalar_lea.vmem [#allocation5], %s24
    %181 = vst [vmem:[%s180] sm:$0xff] %v156
    %s182 = scalar_lea.vmem [#allocation5], %s33
    %183 = vst [vmem:[%s182] sm:$0xff] %v159
    %s184 = scalar_lea.vmem [#allocation5], %s36
    %185 = vst [vmem:[%s184] sm:$0xff] %v160
    %s186 = scalar_lea.vmem [#allocation5], %s27
    %187 = vst [vmem:[%s186] sm:$0xff] %v157
    %s188 = scalar_lea.vmem [#allocation5], %s30
    %189 = vst [vmem:[%s188] sm:$0xff] %v158
    %s190 = scalar_lea.vmem [#allocation5], %s39
    %191 = vst [vmem:[%s190] sm:$0xff] %v161
    %s192 = scalar_lea.vmem [#allocation5], %s42
    %193 = vst [vmem:[%s192] sm:$0xff] %v162
    %s194 = scalar_lea.vmem [#allocation5], %s45
    %195 = vst [vmem:[%s194] sm:$0xff] %v175
    %s196 = scalar_lea.vmem [#allocation5], %s48
    %197 = vst [vmem:[%s196] sm:$0xff] %v176
    %s198 = scalar_lea.vmem [#allocation5], %s57
    %199 = vst [vmem:[%s198] sm:$0xff] %v113
    %s200 = scalar_lea.vmem [#allocation5], %s60
    %201 = vst [vmem:[%s200] sm:$0xff] %v115
    %s202 = scalar_lea.vmem [#allocation5], %s51
    %203 = vst [vmem:[%s202] sm:$0xff] %v177
    %s204 = scalar_lea.vmem [#allocation5], %s54
    %205 = vst [vmem:[%s204] sm:$0xff] %v178
    %s206 = scalar_lea.vmem [#allocation5], %s63
    %207 = vst [vmem:[%s206] sm:$0xff] %v117
    %s208 = scalar_lea.vmem [#allocation5], %s66
    %209 = vst [vmem:[%s208] sm:$0xff] %v118
    // Predicated region
    $region10: #{tpu_custom_call.1} parent=1 // pred_check
      _
    $region11: #{tpu_custom_call.1} parent=1 // pred_check_branch
      %211 = sbr.rel (0) target = $region13
    $region12: #{tpu_custom_call.1} parent=1 // pred_region
      %s213 = ssub.s32 2048, 2048
      %214 = vsyncadd [#allocation4], %s213
      %s215 = sshll.u32 [#allocation5], 4
      %s216 = int_to_ptr.vmem [resolvable:$true] %s215
      %221 = dma.vmem_to_hbm [thread:$0]  %s216, 2048, %s1, [#allocation4], 128, 128, 8
    $region13: #{tpu_custom_call.1} parent=1 // pred_fallthru
      _
    // Predicated region
    $region14: #{tpu_custom_call.1} parent=1 // pred_check
      _
    $region15: #{tpu_custom_call.1} parent=1 // pred_check_branch
      %223 = sbr.rel (0) target = $region17
    $region16: #{tpu_custom_call.1} parent=1 // pred_region
      %224 = dma.done [#allocation4], 2048
    $region17: #{tpu_custom_call.1} parent=1 // pred_fallthru
      _
    %225 = vsyncpa [#allocation3], 1
    %226 = vsyncpa [#allocation4], 1

</llo_original>
